<compile_context>
chip_gen: v7x
topology: tpu7x:2x2x1
jax: 0.10.0
libtpu: 0.0.40
codegen_flags: <defaults>
</compile_context>

<pallas_src>
import jax
import jax.numpy as jnp
from jax.experimental import pallas as pl
from jax.experimental.pallas import tpu as pltpu

H1, H2, H3 = 8, 64, 32          # fc1 / fc2 / fc3 output widths (fixed by the module)
_LANES = 128


def _round_up(x, m):
    return (x + m - 1) // m * m


def _pack_params(params, latent_dim, action_dim):
    """Pack all weights + biases into one (R, 128) f32 slab (a single DMA)."""
    L, A = latent_dim, action_dim
    assert max(L, A, H1, H2, H3) <= _LANES, "dims must fit in one 128-lane vreg"

    r_w2o = 0                            # W2 rows multiplying obs         (L,  H2)
    r_w1 = _round_up(L, 8)               # W1                              (A,  H1)
    r_w2a = r_w1 + _round_up(A, 8)       # W2 rows multiplying relu(fc1)   (H1, H2)
    r_w3 = r_w2a + _round_up(H1, 8)      # W3                              (H2, H3)
    r_w4 = r_w3 + _round_up(H2, 8)       # W4                              (H3, L)
    r_b1 = r_w4 + _round_up(H3, 8)       # biases: one 8-aligned row block each
    r_b2, r_b3, r_b4 = r_b1 + 8, r_b1 + 16, r_b1 + 24
    R = r_b1 + 32

    slab = jnp.zeros((R, _LANES), jnp.float32)
    slab = slab.at[r_w2o:r_w2o + L, 0:H2].set(params["w2"].T[:L, :])
    slab = slab.at[r_w1:r_w1 + A, 0:H1].set(params["w1"].T)
    slab = slab.at[r_w2a:r_w2a + H1, 0:H2].set(params["w2"].T[L:, :])
    slab = slab.at[r_w3:r_w3 + H2, 0:H3].set(params["w3"].T)
    slab = slab.at[r_w4:r_w4 + H3, 0:L].set(params["w4"].T)
    slab = slab.at[r_b1, 0:H1].set(params["b1"])
    slab = slab.at[r_b2, 0:H2].set(params["b2"])
    slab = slab.at[r_b3, 0:H3].set(params["b3"])
    slab = slab.at[r_b4, 0:L].set(params["b4"])

    off = dict(r_w2o=r_w2o, r_w1=r_w1, r_w2a=r_w2a, r_w3=r_w3, r_w4=r_w4,
               r_b1=r_b1, r_b2=r_b2, r_b3=r_b3, r_b4=r_b4, R=R)
    return slab, off


def _make_kernel(L, A, off):
    r_w2o, r_w1, r_w2a = off["r_w2o"], off["r_w1"], off["r_w2a"]
    r_w3, r_w4 = off["r_w3"], off["r_w4"]
    r_b1, r_b2, r_b3, r_b4 = off["r_b1"], off["r_b2"], off["r_b3"], off["r_b4"]

    def kernel(obs_ref, act_ref, w_ref, o_ref):
        obs = obs_ref[...]                                       # (TM, L) f32
        act = act_ref[...]                                       # (TM, A) f32
        # fc1 + relu
        h1 = jnp.maximum(
            jnp.dot(act, w_ref[r_w1:r_w1 + A, 0:H1],
                    preferred_element_type=jnp.float32)
            + w_ref[r_b1:r_b1 + 1, 0:H1], 0.0)                   # (TM, 8)
        # fc2 over the virtual concat [obs | h1] + relu (concat never built)
        h2 = jnp.maximum(
            jnp.dot(obs, w_ref[r_w2o:r_w2o + L, 0:H2],
                    preferred_element_type=jnp.float32)
            + jnp.dot(h1, w_ref[r_w2a:r_w2a + H1, 0:H2],
                      preferred_element_type=jnp.float32)
            + w_ref[r_b2:r_b2 + 1, 0:H2], 0.0)                   # (TM, 64)
        # fc3 + relu
        h3 = jnp.maximum(
            jnp.dot(h2, w_ref[r_w3:r_w3 + H2, 0:H3],
                    preferred_element_type=jnp.float32)
            + w_ref[r_b3:r_b3 + 1, 0:H3], 0.0)                   # (TM, 32)
        # fc4
        o_ref[...] = (jnp.dot(h3, w_ref[r_w4:r_w4 + H3, 0:L],
                              preferred_element_type=jnp.float32)
                      + w_ref[r_b4:r_b4 + 1, 0:L])               # (TM, L)

    return kernel


def one_step_transition(observation, action, params, *, block_rows=4096):
    """observation: (B, latent_dim) f32, action: (B, action_dim) f32."""
    B, L = observation.shape
    A = action.shape[1]
    slab, off = _pack_params(params, L, A)
    R = off["R"]

    # Row tile: as large as possible (amortizes ~0.35us/step grid overhead),
    # but capped at cdiv(B, 2) so grid_b >= 2 and v7x can shard the batch over
    # both TensorCores (costless on 1-TC v5e/v6e).
    tm = min(block_rows, B)
    if B > 8:
        tm = min(tm, pl.cdiv(B, 2))
    tm = max(8, _round_up(tm, 8))
    grid_b = pl.cdiv(B, tm)

    kernel = _make_kernel(L, A, off)
    out = pl.pallas_call(
        kernel,
        out_shape=jax.ShapeDtypeStruct((B, L), jnp.float32),
        grid_spec=pltpu.PrefetchScalarGridSpec(
            num_scalar_prefetch=0,
            grid=(grid_b,),
            in_specs=[
                pl.BlockSpec((tm, L), lambda i: (i, 0)),       # streamed obs
                pl.BlockSpec((tm, A), lambda i: (i, 0)),       # streamed act
                pl.BlockSpec((R, _LANES), lambda i: (0, 0)),   # VMEM-resident params
            ],
            out_specs=pl.BlockSpec((tm, L), lambda i: (i, 0)),
        ),
        compiler_params=pltpu.CompilerParams(
            dimension_semantics=("parallel",),        # v7x: 2 TCs share the batch
            vmem_limit_bytes=48 * 1024 * 1024),       # big tiles; <= v7x 64 MiB
    )(observation.astype(jnp.float32), action.astype(jnp.float32), slab)
    return out


def init_params(key, latent_dim, action_dim):
    """Deterministic PyTorch-style init: U(-1/sqrt(fan_in), 1/sqrt(fan_in))."""
    dims = [
        ("w1", (8, action_dim)), ("b1", (8,)),
        ("w2", (64, latent_dim + 8)), ("b2", (64,)),
        ("w3", (32, 64)), ("b3", (32,)),
        ("w4", (latent_dim, 32)), ("b4", (latent_dim,)),
    ]
    fan_in = {"w1": action_dim, "b1": action_dim,
              "w2": latent_dim + 8, "b2": latent_dim + 8,
              "w3": 64, "b3": 64,
              "w4": 32, "b4": 32}
    params = {}
    keys = jax.random.split(key, len(dims))
    for (name, shape), k in zip(dims, keys):
        bound = 1.0 / jnp.sqrt(jnp.float32(fan_in[name]))
        params[name] = jax.random.uniform(k, shape, jnp.float32, -bound, bound)
    return params


def _reference(observation, action, params):
    """Plain-JAX reference mirroring the PyTorch forward exactly."""
    w1, b1, w2, b2, w3, b3, w4, b4 = (params[k] for k in
                                      ("w1", "b1", "w2", "b2", "w3", "b3", "w4", "b4"))
    x = jnp.maximum(action @ w1.T + b1, 0.0)
    x = jnp.concatenate([observation, x], axis=1)
    x = jnp.maximum(x @ w2.T + b2, 0.0)
    x = jnp.maximum(x @ w3.T + b3, 0.0)
    return x @ w4.T + b4


if __name__ == "__main__":
    latent_dim, action_dim, batch = 32, 4, 8

    key = jax.random.PRNGKey(0)
    k_obs, k_act, k_par, k_obs2, k_act2 = jax.random.split(key, 5)
    observation = jax.random.normal(k_obs, (batch, latent_dim), jnp.float32)
    action = jax.random.normal(k_act, (batch, action_dim), jnp.float32)
    params = init_params(k_par, latent_dim, action_dim)

    out = jax.block_until_ready(one_step_transition(observation, action, params))
    ref = _reference(observation, action, params)
    assert out.shape == (batch, latent_dim)
    assert jnp.allclose(out, ref, atol=1e-4, rtol=1e-4)

    # Exercise the multi-step batch grid (ragged last tile + VMEM-resident params).
    big_b = 1000
    obs_big = jax.random.normal(k_obs2, (big_b, latent_dim), jnp.float32)
    act_big = jax.random.normal(k_act2, (big_b, action_dim), jnp.float32)
    out_big = jax.block_until_ready(
        one_step_transition(obs_big, act_big, params, block_rows=4096))
    ref_big = _reference(obs_big, act_big, params)
    assert out_big.shape == (big_b, latent_dim)
    assert jnp.allclose(out_big, ref_big, atol=1e-4, rtol=1e-4)

    print("KERNEL_OK")
</pallas_src>

<mosaic_0001>
module attributes {stable_mosaic.version = 11 : i64} {
  func.func @kernel(%arg0: i32, %arg1: memref<8x32xf32, #tpu.memory_space<vmem>>, %arg2: memref<8x4xf32, #tpu.memory_space<vmem>>, %arg3: memref<176x128xf32, #tpu.memory_space<vmem>>, %arg4: memref<8x32xf32, #tpu.memory_space<vmem>>) attributes {dimension_semantics = [#tpu.dimension_semantics<parallel>], iteration_bounds = array<i64: 1>, scalar_prefetch = 0 : i64, scratch_operands = 0 : i64, tpu.core_type = #tpu.core_type<tc>, window_params = [{transform_indices = @transform_0, window_bounds = array<i64: 8, 32>}, {transform_indices = @transform_1, window_bounds = array<i64: 8, 4>}, {pipeline_mode = #tpu.pipeline_mode<synchronous>, transform_indices = @transform_2, window_bounds = array<i64: 176, 128>}, {transform_indices = @transform_3, window_bounds = array<i64: 8, 32>}]} {
    %c0 = arith.constant 0 : index
    %c0_0 = arith.constant 0 : index
    %0 = vector.load %arg1[%c0, %c0_0] : memref<8x32xf32, #tpu.memory_space<vmem>>, vector<8x32xf32>
    %c0_1 = arith.constant 0 : index
    %c0_2 = arith.constant 0 : index
    %1 = vector.load %arg2[%c0_1, %c0_2] : memref<8x4xf32, #tpu.memory_space<vmem>>, vector<8x4xf32>
    %c32 = arith.constant 32 : index
    %c0_3 = arith.constant 0 : index
    %2 = vector.load %arg3[%c32, %c0_3] : memref<176x128xf32, #tpu.memory_space<vmem>>, vector<4x8xf32>
    %cst = arith.constant dense<0.000000e+00> : vector<8x8xf32>
    %3 = tpu.matmul %1, %2, %cst {dimension_numbers = #tpu.dot_dimension_numbers<[1], [0], [0], [1], [0, 0, 1, 1], [], []>} : vector<8x4xf32>, vector<4x8xf32>, vector<8x8xf32> -> vector<8x8xf32>
    %c144 = arith.constant 144 : index
    %c0_4 = arith.constant 0 : index
    %4 = vector.load %arg3[%c144, %c0_4] : memref<176x128xf32, #tpu.memory_space<vmem>>, vector<1x8xf32>
    %5 = vector.broadcast %4 : vector<1x8xf32> to vector<8x8xf32>
    %6 = arith.addf %3, %5 : vector<8x8xf32>
    %cst_5 = arith.constant 0.000000e+00 : f32
    %7 = vector.broadcast %cst_5 : f32 to vector<8x8xf32>
    %8 = arith.maximumf %6, %7 : vector<8x8xf32>
    %c0_6 = arith.constant 0 : index
    %c0_7 = arith.constant 0 : index
    %9 = vector.load %arg3[%c0_6, %c0_7] : memref<176x128xf32, #tpu.memory_space<vmem>>, vector<32x64xf32>
    %cst_8 = arith.constant dense<0.000000e+00> : vector<8x64xf32>
    %10 = tpu.matmul %0, %9, %cst_8 {dimension_numbers = #tpu.dot_dimension_numbers<[1], [0], [0], [1], [0, 0, 1, 1], [], []>} : vector<8x32xf32>, vector<32x64xf32>, vector<8x64xf32> -> vector<8x64xf32>
    %c40 = arith.constant 40 : index
    %c0_9 = arith.constant 0 : index
    %11 = vector.load %arg3[%c40, %c0_9] : memref<176x128xf32, #tpu.memory_space<vmem>>, vector<8x64xf32>
    %cst_10 = arith.constant dense<0.000000e+00> : vector<8x64xf32>
    %12 = tpu.matmul %8, %11, %cst_10 {dimension_numbers = #tpu.dot_dimension_numbers<[1], [0], [0], [1], [0, 0, 1, 1], [], []>} : vector<8x8xf32>, vector<8x64xf32>, vector<8x64xf32> -> vector<8x64xf32>
    %13 = arith.addf %10, %12 : vector<8x64xf32>
    %c152 = arith.constant 152 : index
    %c0_11 = arith.constant 0 : index
    %14 = vector.load %arg3[%c152, %c0_11] : memref<176x128xf32, #tpu.memory_space<vmem>>, vector<1x64xf32>
    %15 = vector.broadcast %14 : vector<1x64xf32> to vector<8x64xf32>
    %16 = arith.addf %13, %15 : vector<8x64xf32>
    %cst_12 = arith.constant 0.000000e+00 : f32
    %17 = vector.broadcast %cst_12 : f32 to vector<8x64xf32>
    %18 = arith.maximumf %16, %17 : vector<8x64xf32>
    %c48 = arith.constant 48 : index
    %c0_13 = arith.constant 0 : index
    %19 = vector.load %arg3[%c48, %c0_13] : memref<176x128xf32, #tpu.memory_space<vmem>>, vector<64x32xf32>
    %cst_14 = arith.constant dense<0.000000e+00> : vector<8x32xf32>
    %20 = tpu.matmul %18, %19, %cst_14 {dimension_numbers = #tpu.dot_dimension_numbers<[1], [0], [0], [1], [0, 0, 1, 1], [], []>} : vector<8x64xf32>, vector<64x32xf32>, vector<8x32xf32> -> vector<8x32xf32>
    %c160 = arith.constant 160 : index
    %c0_15 = arith.constant 0 : index
    %21 = vector.load %arg3[%c160, %c0_15] : memref<176x128xf32, #tpu.memory_space<vmem>>, vector<1x32xf32>
    %22 = vector.broadcast %21 : vector<1x32xf32> to vector<8x32xf32>
    %23 = arith.addf %20, %22 : vector<8x32xf32>
    %cst_16 = arith.constant 0.000000e+00 : f32
    %24 = vector.broadcast %cst_16 : f32 to vector<8x32xf32>
    %25 = arith.maximumf %23, %24 : vector<8x32xf32>
    %c112 = arith.constant 112 : index
    %c0_17 = arith.constant 0 : index
    %26 = vector.load %arg3[%c112, %c0_17] : memref<176x128xf32, #tpu.memory_space<vmem>>, vector<32x32xf32>
    %cst_18 = arith.constant dense<0.000000e+00> : vector<8x32xf32>
    %27 = tpu.matmul %25, %26, %cst_18 {dimension_numbers = #tpu.dot_dimension_numbers<[1], [0], [0], [1], [0, 0, 1, 1], [], []>} : vector<8x32xf32>, vector<32x32xf32>, vector<8x32xf32> -> vector<8x32xf32>
    %c168 = arith.constant 168 : index
    %c0_19 = arith.constant 0 : index
    %28 = vector.load %arg3[%c168, %c0_19] : memref<176x128xf32, #tpu.memory_space<vmem>>, vector<1x32xf32>
    %29 = vector.broadcast %28 : vector<1x32xf32> to vector<8x32xf32>
    %30 = arith.addf %27, %29 : vector<8x32xf32>
    %c0_20 = arith.constant 0 : index
    %c0_21 = arith.constant 0 : index
    %31 = vector.load %arg4[%c0_20, %c0_21] : memref<8x32xf32, #tpu.memory_space<vmem>>, vector<8x32xf32>
    tpu.vector_store %arg4[%c0_20, %c0_21], %30 {strides = array<i32>} : memref<8x32xf32, #tpu.memory_space<vmem>>, vector<8x32xf32>,
    return
  }
  func.func @transform_0(%arg0: i32) -> (i32, i32) {
    %c0_i32 = arith.constant 0 : i32
    %c0_i32_0 = arith.constant 0 : i32
    return %arg0, %c0_i32 : i32, i32
  }
  func.func @transform_1(%arg0: i32) -> (i32, i32) {
    %c0_i32 = arith.constant 0 : i32
    %c0_i32_0 = arith.constant 0 : i32
    return %arg0, %c0_i32 : i32, i32
  }
  func.func @transform_2(%arg0: i32) -> (i32, i32) {
    %c0_i32 = arith.constant 0 : i32
    %c0_i32_0 = arith.constant 0 : i32
    %c0_i32_1 = arith.constant 0 : i32
    return %c0_i32, %c0_i32_0 : i32, i32
  }
  func.func @transform_3(%arg0: i32) -> (i32, i32) {
    %c0_i32 = arith.constant 0 : i32
    %c0_i32_0 = arith.constant 0 : i32
    return %arg0, %c0_i32 : i32, i32
  }
}

</mosaic_0001>

<llo_original>
// kernel: tpu_custom_call.1
$region0: #{tpu_custom_call.1}
  #allocation0 [shape = 'u32[]', space=smem, size = 0x4, offset = 0x4, fixed_abs, tag = 'smem constant byte address 0x4 - core index']
  #allocation1 [shape = 'u32[144,128]{1,0:T(1,128)}', space=vmem, size = 0x12000, scoped, tag = 'internal scratch']
  %s0 = inlined_call_operand.vmem [shape: f32[8,32], index: 0, kind: input, shape index: {}]
  %s1 = inlined_call_operand.vmem [shape: f32[8,4], index: 1, kind: input, shape index: {}]
  %s2 = inlined_call_operand.hbm [shape: f32[176,128], index: 2, kind: input, shape index: {}]
  %s3 = inlined_call_operand.hbm [shape: f32[8,32], index: 3, kind: output, shape index: {}]
  %s4 = sld [smem:[#allocation0]]
  $region26: #{tpu_custom_call.1} parent=0
    _
  %s6 = ssub.s32 1, %s4
  %s7 = scalar_select 0, %s6, %s4
  $region1: #{tpu_custom_call.1} parent=0
    #allocation2 [shape = 'u8[90112]{0}', space=vmem, size = 0x16000, scoped, tag = 'input window, operand 2, single buffered']
    #allocation3 [shape = 's32[1]{0}', space=sflag, size = 0x4, scoped, tag = 'scoped memory for tpu_custom_call.1']
    #allocation4 [shape = 's32[1]{0}', space=sflag, size = 0x4, scoped, tag = 'scoped memory for tpu_custom_call.1']
    #allocation5 [shape = 'u8[4096]{0}', space=vmem, size = 0x1000, scoped, tag = 'output window, operand 0, single buffered']
    %8 = vsyncpa [#allocation3], 0
    %9 = vsyncpa [#allocation4], 0
    // Predicated region
    $region2: #{tpu_custom_call.1} parent=1 // pred_check
      _
    $region3: #{tpu_custom_call.1} parent=1 // pred_check_branch
      %11 = sbr.rel (0) target = $region5
    $region4: #{tpu_custom_call.1} parent=1 // pred_region
      _
    $region5: #{tpu_custom_call.1} parent=1 // pred_fallthru
      _
    // Predicated region
    $region6: #{tpu_custom_call.1} parent=1 // pred_check
      _
    $region7: #{tpu_custom_call.1} parent=1 // pred_check_branch
      %13 = sbr.rel (0) target = $region9
    $region8: #{tpu_custom_call.1} parent=1 // pred_region
      _
    $region9: #{tpu_custom_call.1} parent=1 // pred_fallthru
      _
    // Predicated region
    $region10: #{tpu_custom_call.1} parent=1 // pred_check
      _
    $region11: #{tpu_custom_call.1} parent=1 // pred_check_branch
      %15 = sbr.rel (0) target = $region13
    $region12: #{tpu_custom_call.1} parent=1 // pred_region
      %s17 = ssub.s32 2816, 2816
      %18 = vsyncadd [#allocation3], %s17
      %s19 = sshll.u32 [#allocation2], 4
      %s20 = int_to_ptr.vmem [resolvable:$true] %s19
      %25 = dma.hbm_to_vmem [thread:$0]  %s2, 2816, %s20, [#allocation3], 128, 128, 8
    $region13: #{tpu_custom_call.1} parent=1 // pred_fallthru
      _
    // Predicated region
    $region14: #{tpu_custom_call.1} parent=1 // pred_check
      _
    $region15: #{tpu_custom_call.1} parent=1 // pred_check_branch
      %27 = sbr.rel (0) target = $region17
    $region16: #{tpu_custom_call.1} parent=1 // pred_region
      %28 = dma.done [#allocation3], 2816
    $region17: #{tpu_custom_call.1} parent=1 // pred_fallthru
      _
    %v29 = vld [vmem:[%s0] sm:$0xff]
    %v30 = vld [vmem:[%s1] sm:$0xff]
    %v31 = vld [vmem:[#allocation2 + $0x20] sm:$0xf]
    %v32 = vld [vmem:[#allocation2 + $0x90] sm:$0x1]
    %v33 = vlaneseq
    %v34 = vshrl.u32 %v33, 7
    %v35 = vsub.s32 0, %v34
    %v36 = vrot.slane %v32, %v35
    %vm37 = vcmask 31744
    %v39 = vsel %vm37, %v30, 0
    %vm41 = vcmask 1043456
    %v43 = vsel %vm41, %v31, 0
    %45 = vmatprep.subr.mxu0 0.0
    %46 = vmatpush1.msra.mxu0 %v43
    %47 = vmatprep.subr.mxu0 0.0
    %48 = vmatpush1.msra.mxu0 0.0
    %49 = vmatprep.subr.mxu0 0.0
    %50 = vmatpush1.msra.mxu0 0.0
    %51 = vmatprep.subr.mxu0 0.0
    %52 = vmatpush1.msra.mxu0 0.0
    %53 = vmatprep.subr.mxu0 0.0
    %54 = vmatpush1.msra.mxu0 0.0
    %55 = vmatprep.subr.mxu0 0.0
    %56 = vmatpush1.msra.mxu0 0.0
    %57 = vmatprep.subr.mxu0 0.0
    %58 = vmatpush1.msra.mxu0 0.0
    %59 = vmatprep.subr.mxu0 0.0
    %60 = vmatpush1.msra.mxu0 0.0
    %61 = vmatprep.subr.mxu0 0.0
    %62 = vmatpush1.msra.mxu0 0.0
    %63 = vmatprep.subr.mxu0 0.0
    %64 = vmatpush1.msra.mxu0 0.0
    %65 = vmatprep.subr.mxu0 0.0
    %66 = vmatpush1.msra.mxu0 0.0
    %67 = vmatprep.subr.mxu0 0.0
    %68 = vmatpush1.msra.mxu0 0.0
    %69 = vmatprep.subr.mxu0 0.0
    %70 = vmatpush1.msra.mxu0 0.0
    %71 = vmatprep.subr.mxu0 0.0
    %72 = vmatpush1.msra.mxu0 0.0
    %73 = vmatprep.subr.mxu0 0.0
    %74 = vmatpush1.msra.mxu0 0.0
    %75 = vmatprep.subr.mxu0 0.0
    %76 = vmatpush1.msra.mxu0 0.0
    %77 = vmatprep.subr.mxu0 0.0
    %78 = vmatpush1.msra.mxu0 0.0
    %79 = vmatprep.subr.mxu0 0.0
    %80 = vmatpush1.msra.mxu0 0.0
    %81 = vmatprep.subr.mxu0 0.0
    %82 = vmatpush1.msra.mxu0 0.0
    %83 = vmatprep.subr.mxu0 0.0
    %84 = vmatpush1.msra.mxu0 0.0
    %85 = vmatprep.subr.mxu0 0.0
    %86 = vmatpush1.msra.mxu0 0.0
    %87 = vmatprep.subr.mxu0 0.0
    %88 = vmatpush1.msra.mxu0 0.0
    %89 = vmatprep.subr.mxu0 0.0
    %90 = vmatpush1.msra.mxu0 0.0
    %91 = vmatprep.subr.mxu0 0.0
    %92 = vmatpush1.msra.mxu0 0.0
    %93 = vmatprep.subr.mxu0 0.0
    %94 = vmatpush1.msra.mxu0 0.0
    %95 = vmatprep.subr.mxu0 0.0
    %96 = vmatpush1.msra.mxu0 0.0
    %97 = vmatprep.subr.mxu0 0.0
    %98 = vmatpush1.msra.mxu0 0.0
    %99 = vmatprep.subr.mxu0 0.0
    %100 = vmatpush1.msra.mxu0 0.0
    %101 = vmatprep.subr.mxu0 0.0
    %102 = vmatpush1.msra.mxu0 0.0
    %103 = vmatprep.subr.mxu0 0.0
    %104 = vmatpush1.msra.mxu0 0.0
    %105 = vmatprep.subr.mxu0 0.0
    %106 = vmatpush1.msra.mxu0 0.0
    %107 = vmatprep.subr.mxu0 0.0
    %108 = vmatpush1.msra.mxu0 0.0
    %109 = vmatprep.mubr.f32.mxu0 0.0
    %110 = vmatmul.mubr.f32.gmra.mrb[0].mxu0 %v39
    %v111 = vpop.f32.mrb[0].mxu0
    %v112 = vadd.f32 %v36, %v111
    %v113 = vpop.f32.mrb[0].mxu0
    %114 = vdwg.mxu0
    %v115 = vmax.f32 %v112, 0.0
    %v116 = vld [vmem:[#allocation2] sm:$0xff]
    %v117 = vld [vmem:[#allocation2 + $0x8] sm:$0xff]
    %v118 = vld [vmem:[#allocation2 + $0x10] sm:$0xff]
    %v119 = vld [vmem:[#allocation2 + $0x18] sm:$0xff]
    %v120 = vld [vmem:[#allocation2 + $0x28] sm:$0xff]
    %vm121 = vcmask 64512
    %v123 = vsel %vm121, %v115, 0
    %125 = vmatprep.subr.mxu0 0.0
    %126 = vmatpush1.msra.mxu0 %v120
    %127 = vmatprep.subr.mxu0 0.0
    %128 = vmatpush1.msra.mxu0 0.0
    %129 = vmatprep.subr.mxu0 0.0
    %130 = vmatpush1.msra.mxu0 0.0
    %131 = vmatprep.subr.mxu0 0.0
    %132 = vmatpush1.msra.mxu0 0.0
    %133 = vmatprep.subr.mxu0 0.0
    %134 = vmatpush1.msra.mxu0 0.0
    %135 = vmatprep.subr.mxu0 0.0
    %136 = vmatpush1.msra.mxu0 0.0
    %137 = vmatprep.subr.mxu0 0.0
    %138 = vmatpush1.msra.mxu0 0.0
    %139 = vmatprep.subr.mxu0 0.0
    %140 = vmatpush1.msra.mxu0 0.0
    %141 = vmatprep.subr.mxu0 0.0
    %142 = vmatpush1.msra.mxu0 0.0
    %143 = vmatprep.subr.mxu0 0.0
    %144 = vmatpush1.msra.mxu0 0.0
    %145 = vmatprep.subr.mxu0 0.0
    %146 = vmatpush1.msra.mxu0 0.0
    %147 = vmatprep.subr.mxu0 0.0
    %148 = vmatpush1.msra.mxu0 0.0
    %149 = vmatprep.subr.mxu0 0.0
    %150 = vmatpush1.msra.mxu0 0.0
    %151 = vmatprep.subr.mxu0 0.0
    %152 = vmatpush1.msra.mxu0 0.0
    %153 = vmatprep.subr.mxu0 0.0
    %154 = vmatpush1.msra.mxu0 0.0
    %155 = vmatprep.subr.mxu0 0.0
    %156 = vmatpush1.msra.mxu0 0.0
    %157 = vmatprep.subr.mxu0 0.0
    %158 = vmatpush1.msra.mxu0 0.0
    %159 = vmatprep.subr.mxu0 0.0
    %160 = vmatpush1.msra.mxu0 0.0
    %161 = vmatprep.subr.mxu0 0.0
    %162 = vmatpush1.msra.mxu0 0.0
    %163 = vmatprep.subr.mxu0 0.0
    %164 = vmatpush1.msra.mxu0 0.0
    %165 = vmatprep.subr.mxu0 0.0
    %166 = vmatpush1.msra.mxu0 0.0
    %167 = vmatprep.subr.mxu0 0.0
    %168 = vmatpush1.msra.mxu0 0.0
    %169 = vmatprep.subr.mxu0 0.0
    %170 = vmatpush1.msra.mxu0 0.0
    %171 = vmatprep.subr.mxu0 0.0
    %172 = vmatpush1.msra.mxu0 0.0
    %173 = vmatprep.subr.mxu0 0.0
    %174 = vmatpush1.msra.mxu0 0.0
    %175 = vmatprep.subr.mxu0 0.0
    %176 = vmatpush1.msra.mxu0 0.0
    %177 = vmatprep.subr.mxu0 0.0
    %178 = vmatpush1.msra.mxu0 0.0
    %179 = vmatprep.subr.mxu0 0.0
    %180 = vmatpush1.msra.mxu0 0.0
    %181 = vmatprep.subr.mxu0 0.0
    %182 = vmatpush1.msra.mxu0 0.0
    %183 = vmatprep.subr.mxu0 0.0
    %184 = vmatpush1.msra.mxu0 0.0
    %185 = vmatprep.subr.mxu0 0.0
    %186 = vmatpush1.msra.mxu0 0.0
    %187 = vmatprep.subr.mxu0 0.0
    %188 = vmatpush1.msra.mxu0 0.0
    %189 = vmatprep.mubr.f32.mxu0 0.0
    %190 = vmatmul.mubr.f32.gmra.mrb[0].mxu0 %v123
    %v191 = vpop.f32.mrb[0].mxu0
    %v192 = vadd.f32 0.0, %v191
    %v193 = vpop.f32.mrb[0].mxu0
    %194 = vdwg.mxu0
    %vm195 = vcmask 261120
    %v197 = vsel %vm195, %v29, 0
    %199 = vmatprep.subr.mxu0 0.0
    %200 = vmatpush1.msra.mxu0 %v116
    %201 = vmatprep.subr.mxu0 0.0
    %202 = vmatpush1.msra.mxu0 %v117
    %203 = vmatprep.subr.mxu0 0.0
    %204 = vmatpush1.msra.mxu0 %v118
    %205 = vmatprep.subr.mxu0 0.0
    %206 = vmatpush1.msra.mxu0 %v119
    %207 = vmatprep.subr.mxu0 0.0
    %208 = vmatpush1.msra.mxu0 0.0
    %209 = vmatprep.subr.mxu0 0.0
    %210 = vmatpush1.msra.mxu0 0.0
    %211 = vmatprep.subr.mxu0 0.0
    %212 = vmatpush1.msra.mxu0 0.0
    %213 = vmatprep.subr.mxu0 0.0
    %214 = vmatpush1.msra.mxu0 0.0
    %215 = vmatprep.subr.mxu0 0.0
    %216 = vmatpush1.msra.mxu0 0.0
    %217 = vmatprep.subr.mxu0 0.0
    %218 = vmatpush1.msra.mxu0 0.0
    %219 = vmatprep.subr.mxu0 0.0
    %220 = vmatpush1.msra.mxu0 0.0
    %221 = vmatprep.subr.mxu0 0.0
    %222 = vmatpush1.msra.mxu0 0.0
    %223 = vmatprep.subr.mxu0 0.0
    %224 = vmatpush1.msra.mxu0 0.0
    %225 = vmatprep.subr.mxu0 0.0
    %226 = vmatpush1.msra.mxu0 0.0
    %227 = vmatprep.subr.mxu0 0.0
    %228 = vmatpush1.msra.mxu0 0.0
    %229 = vmatprep.subr.mxu0 0.0
    %230 = vmatpush1.msra.mxu0 0.0
    %231 = vmatprep.subr.mxu0 0.0
    %232 = vmatpush1.msra.mxu0 0.0
    %233 = vmatprep.subr.mxu0 0.0
    %234 = vmatpush1.msra.mxu0 0.0
    %235 = vmatprep.subr.mxu0 0.0
    %236 = vmatpush1.msra.mxu0 0.0
    %237 = vmatprep.subr.mxu0 0.0
    %238 = vmatpush1.msra.mxu0 0.0
    %239 = vmatprep.subr.mxu0 0.0
    %240 = vmatpush1.msra.mxu0 0.0
    %241 = vmatprep.subr.mxu0 0.0
    %242 = vmatpush1.msra.mxu0 0.0
    %243 = vmatprep.subr.mxu0 0.0
    %244 = vmatpush1.msra.mxu0 0.0
    %245 = vmatprep.subr.mxu0 0.0
    %246 = vmatpush1.msra.mxu0 0.0
    %247 = vmatprep.subr.mxu0 0.0
    %248 = vmatpush1.msra.mxu0 0.0
    %249 = vmatprep.subr.mxu0 0.0
    %250 = vmatpush1.msra.mxu0 0.0
    %251 = vmatprep.subr.mxu0 0.0
    %252 = vmatpush1.msra.mxu0 0.0
    %253 = vmatprep.subr.mxu0 0.0
    %254 = vmatpush1.msra.mxu0 0.0
    %255 = vmatprep.subr.mxu0 0.0
    %256 = vmatpush1.msra.mxu0 0.0
    %257 = vmatprep.subr.mxu0 0.0
    %258 = vmatpush1.msra.mxu0 0.0
    %259 = vmatprep.subr.mxu0 0.0
    %260 = vmatpush1.msra.mxu0 0.0
    %261 = vmatprep.subr.mxu0 0.0
    %262 = vmatpush1.msra.mxu0 0.0
    %263 = vmatprep.mubr.f32.mxu0 0.0
    %264 = vmatmul.mubr.f32.gmra.mrb[0].mxu0 %v197
    %v265 = vpop.f32.mrb[0].mxu0
    %v266 = vadd.f32 %v192, %v265
    %v267 = vpop.f32.mrb[0].mxu0
    %268 = vdwg.mxu0
    %v269 = vld [vmem:[#allocation2 + $0x98] sm:$0x1]
    %v270 = vlaneseq
    %v271 = vshrl.u32 %v270, 7
    %v272 = vsub.s32 0, %v271
    %v273 = vrot.slane %v269, %v272
    %v274 = vadd.f32 %v266, %v273
    %v275 = vmax.f32 %v274, 0.0
    %v276 = vld [vmem:[#allocation2 + $0x30] sm:$0xff]
    %v277 = vld [vmem:[#allocation2 + $0x38] sm:$0xff]
    %v278 = vld [vmem:[#allocation2 + $0x40] sm:$0xff]
    %v279 = vld [vmem:[#allocation2 + $0x48] sm:$0xff]
    %v280 = vld [vmem:[#allocation2 + $0x50] sm:$0xff]
    %v281 = vld [vmem:[#allocation2 + $0x58] sm:$0xff]
    %v282 = vld [vmem:[#allocation2 + $0x60] sm:$0xff]
    %v283 = vld [vmem:[#allocation2 + $0x68] sm:$0xff]
    %v284 = vld [vmem:[#allocation2 + $0xa0] sm:$0x1]
    %v285 = vlaneseq
    %v286 = vshrl.u32 %v285, 7
    %v287 = vsub.s32 0, %v286
    %v288 = vrot.slane %v284, %v287
    %vm289 = vcmask 523264
    %v291 = vsel %vm289, %v275, 0
    %293 = vmatprep.subr.mxu0 0.0
    %294 = vmatpush1.msra.mxu0 %v276
    %295 = vmatprep.subr.mxu0 0.0
    %296 = vmatpush1.msra.mxu0 %v277
    %297 = vmatprep.subr.mxu0 0.0
    %298 = vmatpush1.msra.mxu0 %v278
    %299 = vmatprep.subr.mxu0 0.0
    %300 = vmatpush1.msra.mxu0 %v279
    %301 = vmatprep.subr.mxu0 0.0
    %302 = vmatpush1.msra.mxu0 %v280
    %303 = vmatprep.subr.mxu0 0.0
    %304 = vmatpush1.msra.mxu0 %v281
    %305 = vmatprep.subr.mxu0 0.0
    %306 = vmatpush1.msra.mxu0 %v282
    %307 = vmatprep.subr.mxu0 0.0
    %308 = vmatpush1.msra.mxu0 %v283
    %309 = vmatprep.subr.mxu0 0.0
    %310 = vmatpush1.msra.mxu0 0.0
    %311 = vmatprep.subr.mxu0 0.0
    %312 = vmatpush1.msra.mxu0 0.0
    %313 = vmatprep.subr.mxu0 0.0
    %314 = vmatpush1.msra.mxu0 0.0
    %315 = vmatprep.subr.mxu0 0.0
    %316 = vmatpush1.msra.mxu0 0.0
    %317 = vmatprep.subr.mxu0 0.0
    %318 = vmatpush1.msra.mxu0 0.0
    %319 = vmatprep.subr.mxu0 0.0
    %320 = vmatpush1.msra.mxu0 0.0
    %321 = vmatprep.subr.mxu0 0.0
    %322 = vmatpush1.msra.mxu0 0.0
    %323 = vmatprep.subr.mxu0 0.0
    %324 = vmatpush1.msra.mxu0 0.0
    %325 = vmatprep.subr.mxu0 0.0
    %326 = vmatpush1.msra.mxu0 0.0
    %327 = vmatprep.subr.mxu0 0.0
    %328 = vmatpush1.msra.mxu0 0.0
    %329 = vmatprep.subr.mxu0 0.0
    %330 = vmatpush1.msra.mxu0 0.0
    %331 = vmatprep.subr.mxu0 0.0
    %332 = vmatpush1.msra.mxu0 0.0
    %333 = vmatprep.subr.mxu0 0.0
    %334 = vmatpush1.msra.mxu0 0.0
    %335 = vmatprep.subr.mxu0 0.0
    %336 = vmatpush1.msra.mxu0 0.0
    %337 = vmatprep.subr.mxu0 0.0
    %338 = vmatpush1.msra.mxu0 0.0
    %339 = vmatprep.subr.mxu0 0.0
    %340 = vmatpush1.msra.mxu0 0.0
    %341 = vmatprep.subr.mxu0 0.0
    %342 = vmatpush1.msra.mxu0 0.0
    %343 = vmatprep.subr.mxu0 0.0
    %344 = vmatpush1.msra.mxu0 0.0
    %345 = vmatprep.subr.mxu0 0.0
    %346 = vmatpush1.msra.mxu0 0.0
    %347 = vmatprep.subr.mxu0 0.0
    %348 = vmatpush1.msra.mxu0 0.0
    %349 = vmatprep.subr.mxu0 0.0
    %350 = vmatpush1.msra.mxu0 0.0
    %351 = vmatprep.subr.mxu0 0.0
    %352 = vmatpush1.msra.mxu0 0.0
    %353 = vmatprep.subr.mxu0 0.0
    %354 = vmatpush1.msra.mxu0 0.0
    %355 = vmatprep.subr.mxu0 0.0
    %356 = vmatpush1.msra.mxu0 0.0
    %357 = vmatprep.mubr.f32.mxu0 0.0
    %358 = vmatmul.mubr.f32.gmra.mrb[0].mxu0 %v291
    %v359 = vpop.f32.mrb[0].mxu0
    %v360 = vadd.f32 %v288, %v359
    %v361 = vpop.f32.mrb[0].mxu0
    %362 = vdwg.mxu0
    %v363 = vmax.f32 %v360, 0.0
    %v364 = vld [vmem:[#allocation2 + $0x70] sm:$0xff]
    %v365 = vld [vmem:[#allocation2 + $0x78] sm:$0xff]
    %v366 = vld [vmem:[#allocation2 + $0x80] sm:$0xff]
    %v367 = vld [vmem:[#allocation2 + $0x88] sm:$0xff]
    %v368 = vld [vmem:[#allocation2 + $0xa8] sm:$0x1]
    %v369 = vlaneseq
    %v370 = vshrl.u32 %v369, 7
    %v371 = vsub.s32 0, %v370
    %v372 = vrot.slane %v368, %v371
    %v374 = vsel %vm195, %v363, 0
    %376 = vmatprep.subr.mxu0 0.0
    %377 = vmatpush1.msra.mxu0 %v364
    %378 = vmatprep.subr.mxu0 0.0
    %379 = vmatpush1.msra.mxu0 %v365
    %380 = vmatprep.subr.mxu0 0.0
    %381 = vmatpush1.msra.mxu0 %v366
    %382 = vmatprep.subr.mxu0 0.0
    %383 = vmatpush1.msra.mxu0 %v367
    %384 = vmatprep.subr.mxu0 0.0
    %385 = vmatpush1.msra.mxu0 0.0
    %386 = vmatprep.subr.mxu0 0.0
    %387 = vmatpush1.msra.mxu0 0.0
    %388 = vmatprep.subr.mxu0 0.0
    %389 = vmatpush1.msra.mxu0 0.0
    %390 = vmatprep.subr.mxu0 0.0
    %391 = vmatpush1.msra.mxu0 0.0
    %392 = vmatprep.subr.mxu0 0.0
    %393 = vmatpush1.msra.mxu0 0.0
    %394 = vmatprep.subr.mxu0 0.0
    %395 = vmatpush1.msra.mxu0 0.0
    %396 = vmatprep.subr.mxu0 0.0
    %397 = vmatpush1.msra.mxu0 0.0
    %398 = vmatprep.subr.mxu0 0.0
    %399 = vmatpush1.msra.mxu0 0.0
    %400 = vmatprep.subr.mxu0 0.0
    %401 = vmatpush1.msra.mxu0 0.0
    %402 = vmatprep.subr.mxu0 0.0
    %403 = vmatpush1.msra.mxu0 0.0
    %404 = vmatprep.subr.mxu0 0.0
    %405 = vmatpush1.msra.mxu0 0.0
    %406 = vmatprep.subr.mxu0 0.0
    %407 = vmatpush1.msra.mxu0 0.0
    %408 = vmatprep.subr.mxu0 0.0
    %409 = vmatpush1.msra.mxu0 0.0
    %410 = vmatprep.subr.mxu0 0.0
    %411 = vmatpush1.msra.mxu0 0.0
    %412 = vmatprep.subr.mxu0 0.0
    %413 = vmatpush1.msra.mxu0 0.0
    %414 = vmatprep.subr.mxu0 0.0
    %415 = vmatpush1.msra.mxu0 0.0
    %416 = vmatprep.subr.mxu0 0.0
    %417 = vmatpush1.msra.mxu0 0.0
    %418 = vmatprep.subr.mxu0 0.0
    %419 = vmatpush1.msra.mxu0 0.0
    %420 = vmatprep.subr.mxu0 0.0
    %421 = vmatpush1.msra.mxu0 0.0
    %422 = vmatprep.subr.mxu0 0.0
    %423 = vmatpush1.msra.mxu0 0.0
    %424 = vmatprep.subr.mxu0 0.0
    %425 = vmatpush1.msra.mxu0 0.0
    %426 = vmatprep.subr.mxu0 0.0
    %427 = vmatpush1.msra.mxu0 0.0
    %428 = vmatprep.subr.mxu0 0.0
    %429 = vmatpush1.msra.mxu0 0.0
    %430 = vmatprep.subr.mxu0 0.0
    %431 = vmatpush1.msra.mxu0 0.0
    %432 = vmatprep.subr.mxu0 0.0
    %433 = vmatpush1.msra.mxu0 0.0
    %434 = vmatprep.subr.mxu0 0.0
    %435 = vmatpush1.msra.mxu0 0.0
    %436 = vmatprep.subr.mxu0 0.0
    %437 = vmatpush1.msra.mxu0 0.0
    %438 = vmatprep.subr.mxu0 0.0
    %439 = vmatpush1.msra.mxu0 0.0
    %440 = vmatprep.mubr.f32.mxu0 0.0
    %441 = vmatmul.mubr.f32.gmra.mrb[0].mxu0 %v374
    %v442 = vpop.f32.mrb[0].mxu0
    %v443 = vadd.f32 %v372, %v442
    %v444 = vpop.f32.mrb[0].mxu0
    %445 = vdwg.mxu0
    %446 = vst.msk [vmem:[#allocation5] sm:$0xff] %vm195, %v443
    // Predicated region
    $region18: #{tpu_custom_call.1} parent=1 // pred_check
      _
    $region19: #{tpu_custom_call.1} parent=1 // pred_check_branch
      %448 = sbr.rel (0) target = $region21
    $region20: #{tpu_custom_call.1} parent=1 // pred_region
      %s450 = ssub.s32 128, 128
      %451 = vsyncadd [#allocation4], %s450
      %s453 = sshll.u32 [#allocation5], 4
      %s454 = int_to_ptr.vmem [resolvable:$true] %s453
      %456 = dma.vmem_to_hbm [thread:$0]  %s454, 128, %s3, [#allocation4]
    $region21: #{tpu_custom_call.1} parent=1 // pred_fallthru
      _
    // Predicated region
    $region22: #{tpu_custom_call.1} parent=1 // pred_check
      _
    $region23: #{tpu_custom_call.1} parent=1 // pred_check_branch
      %458 = sbr.rel (0) target = $region25
    $region24: #{tpu_custom_call.1} parent=1 // pred_region
      %459 = dma.done [#allocation4], 128
    $region25: #{tpu_custom_call.1} parent=1 // pred_fallthru
      _
    %460 = vsyncpa [#allocation3], 1
    %461 = vsyncpa [#allocation4], 1

</llo_original>
